<compile_context>
chip_gen: v5e
topology: v5e:2x2
jax: 0.10.0
libtpu: 0.0.40
codegen_flags: <defaults>
</compile_context>

<pallas_src>
import numpy as np
import jax
import jax.numpy as jnp
from jax.experimental import pallas as pl
from jax.experimental.pallas import tpu as pltpu

F32 = jnp.float32
_T = 128          # output samples per Toeplitz chunk (one lane tile)
_D = 256          # contraction depth = next multiple of 128 >= _T + K - 1


def _round_up(n, m):
    return -(-n // m) * m


# ------------------------------ Pallas kernel --------------------------------
def _sinc_conv_kernel(x2_ref, w_ref, out_ref):
    """One batch element x one chunk-tile of the Toeplitz-form convolution.

    x2_ref:  (Mt, D)     Mt overlapping 256-sample windows of the waveform;
                         window j holds x[j*128 : j*128 + 256].
    w_ref:   (C, D, T)   Toeplitz-expanded filter bank, w[c, t + k, t] = f[c, k].
    out_ref: (C, Mt, T)  out[c, j, t] = conv1d(x, f)[c, j*128 + t].
    """
    x2 = x2_ref[...]                                    # (Mt, 256), lane aligned
    for c in range(out_ref.shape[0]):                   # static unroll, C small
        # (Mt, 256) @ (256, 128) on the MXU; dense aligned (Mt, 128) store.
        out_ref[c] = jnp.dot(x2, w_ref[c], preferred_element_type=F32)


def sinc_conv(x, filt, chunk_block=64):
    """x: (B, 1, Lraw) f32; filt: numpy (C, K) f32 -> (B, C, Lraw - K + 1) f32.

    Equivalent to F.conv1d(x, filt[:, None, :], stride=1, padding=0, dilation=1).
    """
    filt = np.asarray(filt, np.float32)
    B, Cin, Lraw = x.shape
    assert Cin == 1, "SincConv only supports one input channel"
    C, K = filt.shape
    assert K <= _T + 1 and Lraw >= K
    Lvalid = Lraw - K + 1

    # --- chunking: 128 output samples per chunk, Mt chunks per grid step -----
    chunk_block = _round_up(chunk_block, 8)
    num_chunks = _round_up(Lvalid, _T) // _T
    Mt = min(chunk_block, _round_up(num_chunks, 8))          # multiple of 8 sublanes
    if B * (_round_up(num_chunks, Mt) // Mt) < 2 and num_chunks >= 16:
        # Keep >= 2 parallel grid steps so both v7x TensorCores are busy.
        Mt = _round_up(-(-num_chunks // 2), 8)
    NC = _round_up(num_chunks, Mt)

    # --- host-side Toeplitz expansion of the filter bank ----------------------
    # w3[c, t + k, t] = filt[c, k]  =>  out[c, j*T + t] = sum_d x2[j, d] * w3[c, d, t]
    w3 = np.zeros((C, _D, _T), np.float32)
    for t in range(_T):
        w3[:, t:t + K, t] = filt
    w3 = jnp.asarray(w3)

    # --- overlapping 256-sample windows: pure lane-aligned layout plumbing ----
    xf = x[:, 0, :]
    x_pad = jnp.pad(xf, ((0, 0), (0, (NC + 1) * _T - Lraw)))
    xr = x_pad.reshape(B, NC + 1, _T)
    x2 = jnp.concatenate([xr[:, :NC, :], xr[:, 1:, :]], axis=2)   # (B, NC, 256)

    grid = (B, NC // Mt)
    cost = pl.CostEstimate(
        flops=2 * B * NC * _D * C * _T,
        transcendentals=0,
        bytes_accessed=4 * (B * NC * _D + C * _D * _T + B * C * NC * _T))

    out = pl.pallas_call(
        _sinc_conv_kernel,
        grid=grid,
        in_specs=[
            pl.BlockSpec((None, Mt, _D), lambda b, i: (b, i, 0)),   # batch dim squeezed
            pl.BlockSpec((C, _D, _T), lambda b, i: (0, 0, 0)),      # resident filter bank
        ],
        out_specs=pl.BlockSpec((None, C, Mt, _T), lambda b, i: (b, 0, i, 0)),
        out_shape=jax.ShapeDtypeStruct((B, C, NC, _T), F32),
        compiler_params=pltpu.CompilerParams(
            dimension_semantics=("parallel", "parallel")),
        cost_estimate=cost,
    )(x2, w3)

    # Lane padding (Lvalid -> NC*128) is dropped once at the model boundary.
    return out.reshape(B, C, NC * _T)[:, :, :Lvalid]


# ---------------------- filter construction (as in the module) ---------------
def make_sinc_filters(out_channels, kernel_size, sample_rate=16000,
                      freq_scale='Mel'):
    """Exact reproduction of SincConv's deterministic band-pass filter bank.

    Returns (filters (out_channels, K) float32 numpy, adjusted odd kernel size K).
    """
    oc = out_channels + 1                       # module's self.out_channels
    if kernel_size % 2 == 0:
        kernel_size += 1
    NFFT = 512
    f = int(sample_rate / 2) * np.linspace(0, 1, int(NFFT / 2) + 1)
    fmel = 2595 * np.log10(1 + f / 700)         # to_mel
    if freq_scale == 'Mel':
        filbandwidthsmel = np.linspace(np.min(fmel), np.max(fmel), oc + 2)
        filbandwidthsf = 700 * (10 ** (filbandwidthsmel / 2595) - 1)  # to_hz
        freq = filbandwidthsf[:oc]
    elif freq_scale == 'Inverse-mel':
        filbandwidthsmel = np.linspace(np.min(fmel), np.max(fmel), oc + 2)
        filbandwidthsf = 700 * (10 ** (filbandwidthsmel / 2595) - 1)
        mel = filbandwidthsf[:oc]
        freq = np.abs(np.flip(mel) - 1)
    else:
        filbandwidthsmel = np.linspace(np.min(f), np.max(f), oc + 2)
        freq = filbandwidthsmel[:oc]
    hsupp = np.arange(-(kernel_size - 1) / 2, (kernel_size - 1) / 2 + 1)
    band = np.zeros((oc - 1, kernel_size))
    for i in range(len(freq) - 1):
        fmin, fmax = freq[i], freq[i + 1]
        hHigh = 2 * fmax / sample_rate * np.sinc(2 * fmax * hsupp / sample_rate)
        hLow = 2 * fmin / sample_rate * np.sinc(2 * fmin * hsupp / sample_rate)
        band[i, :] = np.hamming(kernel_size) * (hHigh - hLow)
    return band.astype(np.float32), kernel_size


# --------------------------------- demo / check -------------------------------
if __name__ == "__main__":
    OUT_CHANNELS = 8      # SincConv(out_channels=8, ...) -> 8 band-pass filters
    KERNEL_SIZE = 20      # even -> module bumps it to 21
    B, L = 2, 2048

    filt, K = make_sinc_filters(OUT_CHANNELS, KERNEL_SIZE)   # numpy (8, 21)
    x = jax.random.normal(jax.random.PRNGKey(0), (B, 1, L), F32)

    out = jax.block_until_ready(sinc_conv(x, filt))

    # float64 numpy reference of F.conv1d(x, filters, stride=1, padding=0)
    xn = np.asarray(x).astype(np.float64)
    fn = filt.astype(np.float64)
    Lvalid = L - K + 1
    ref = np.zeros((B, fn.shape[0], Lvalid), np.float64)
    for k in range(K):
        ref += fn[None, :, k:k + 1] * xn[:, :, k:k + Lvalid]

    assert out.shape == (B, fn.shape[0], Lvalid)
    np.testing.assert_allclose(np.asarray(out), ref, rtol=1e-5, atol=2e-5)
    print("KERNEL_OK")
</pallas_src>

<mosaic_0001>
module attributes {stable_mosaic.version = 11 : i64} {
  func.func @_sinc_conv_kernel(%arg0: i32, %arg1: i32, %arg2: memref<1x16x256xf32, #tpu.memory_space<vmem>>, %arg3: memref<8x256x128xf32, #tpu.memory_space<vmem>>, %arg4: memref<1x8x16x128xf32, #tpu.memory_space<vmem>>) attributes {dimension_semantics = [#tpu.dimension_semantics<parallel>, #tpu.dimension_semantics<parallel>], iteration_bounds = array<i64: 2, 1>, scalar_prefetch = 0 : i64, scratch_operands = 0 : i64, tpu.core_type = #tpu.core_type<tc>, window_params = [{transform_indices = @transform_0, window_bounds = array<i64: 1, 16, 256>}, {pipeline_mode = #tpu.pipeline_mode<synchronous>, transform_indices = @transform_1, window_bounds = array<i64: 8, 256, 128>}, {transform_indices = @transform_2, window_bounds = array<i64: 1, 8, 16, 128>}]} {
    %c0 = arith.constant 0 : index
    %c0_0 = arith.constant 0 : index
    %c0_1 = arith.constant 0 : index
    %0 = vector.load %arg2[%c0, %c0_0, %c0_1] : memref<1x16x256xf32, #tpu.memory_space<vmem>>, vector<1x16x256xf32>
    %1 = vector.shape_cast %0 : vector<1x16x256xf32> to vector<16x256xf32>
    %c0_2 = arith.constant 0 : index
    %c0_3 = arith.constant 0 : index
    %c0_4 = arith.constant 0 : index
    %2 = vector.load %arg3[%c0_2, %c0_3, %c0_4] : memref<8x256x128xf32, #tpu.memory_space<vmem>>, vector<1x256x128xf32>
    %3 = vector.shape_cast %2 : vector<1x256x128xf32> to vector<256x128xf32>
    %cst = arith.constant dense<0.000000e+00> : vector<16x128xf32>
    %4 = tpu.matmul %1, %3, %cst {dimension_numbers = #tpu.dot_dimension_numbers<[1], [0], [0], [1], [0, 0, 1, 1], [], []>} : vector<16x256xf32>, vector<256x128xf32>, vector<16x128xf32> -> vector<16x128xf32>
    %c0_5 = arith.constant 0 : index
    %c0_6 = arith.constant 0 : index
    %c0_7 = arith.constant 0 : index
    %c0_8 = arith.constant 0 : index
    %5 = vector.load %arg4[%c0_5, %c0_6, %c0_7, %c0_8] : memref<1x8x16x128xf32, #tpu.memory_space<vmem>>, vector<1x1x16x128xf32>
    %6 = vector.shape_cast %5 : vector<1x1x16x128xf32> to vector<16x128xf32>
    %7 = vector.shape_cast %4 : vector<16x128xf32> to vector<1x1x16x128xf32>
    tpu.vector_store %arg4[%c0_5, %c0_6, %c0_7, %c0_8], %7 {strides = array<i32>} : memref<1x8x16x128xf32, #tpu.memory_space<vmem>>, vector<1x1x16x128xf32>,
    %c1 = arith.constant 1 : index
    %c0_9 = arith.constant 0 : index
    %c0_10 = arith.constant 0 : index
    %8 = vector.load %arg3[%c1, %c0_9, %c0_10] : memref<8x256x128xf32, #tpu.memory_space<vmem>>, vector<1x256x128xf32>
    %9 = vector.shape_cast %8 : vector<1x256x128xf32> to vector<256x128xf32>
    %cst_11 = arith.constant dense<0.000000e+00> : vector<16x128xf32>
    %10 = tpu.matmul %1, %9, %cst_11 {dimension_numbers = #tpu.dot_dimension_numbers<[1], [0], [0], [1], [0, 0, 1, 1], [], []>} : vector<16x256xf32>, vector<256x128xf32>, vector<16x128xf32> -> vector<16x128xf32>
    %c0_12 = arith.constant 0 : index
    %c1_13 = arith.constant 1 : index
    %c0_14 = arith.constant 0 : index
    %c0_15 = arith.constant 0 : index
    %11 = vector.load %arg4[%c0_12, %c1_13, %c0_14, %c0_15] : memref<1x8x16x128xf32, #tpu.memory_space<vmem>>, vector<1x1x16x128xf32>
    %12 = vector.shape_cast %11 : vector<1x1x16x128xf32> to vector<16x128xf32>
    %13 = vector.shape_cast %10 : vector<16x128xf32> to vector<1x1x16x128xf32>
    tpu.vector_store %arg4[%c0_12, %c1_13, %c0_14, %c0_15], %13 {strides = array<i32>} : memref<1x8x16x128xf32, #tpu.memory_space<vmem>>, vector<1x1x16x128xf32>,
    %c2 = arith.constant 2 : index
    %c0_16 = arith.constant 0 : index
    %c0_17 = arith.constant 0 : index
    %14 = vector.load %arg3[%c2, %c0_16, %c0_17] : memref<8x256x128xf32, #tpu.memory_space<vmem>>, vector<1x256x128xf32>
    %15 = vector.shape_cast %14 : vector<1x256x128xf32> to vector<256x128xf32>
    %cst_18 = arith.constant dense<0.000000e+00> : vector<16x128xf32>
    %16 = tpu.matmul %1, %15, %cst_18 {dimension_numbers = #tpu.dot_dimension_numbers<[1], [0], [0], [1], [0, 0, 1, 1], [], []>} : vector<16x256xf32>, vector<256x128xf32>, vector<16x128xf32> -> vector<16x128xf32>
    %c0_19 = arith.constant 0 : index
    %c2_20 = arith.constant 2 : index
    %c0_21 = arith.constant 0 : index
    %c0_22 = arith.constant 0 : index
    %17 = vector.load %arg4[%c0_19, %c2_20, %c0_21, %c0_22] : memref<1x8x16x128xf32, #tpu.memory_space<vmem>>, vector<1x1x16x128xf32>
    %18 = vector.shape_cast %17 : vector<1x1x16x128xf32> to vector<16x128xf32>
    %19 = vector.shape_cast %16 : vector<16x128xf32> to vector<1x1x16x128xf32>
    tpu.vector_store %arg4[%c0_19, %c2_20, %c0_21, %c0_22], %19 {strides = array<i32>} : memref<1x8x16x128xf32, #tpu.memory_space<vmem>>, vector<1x1x16x128xf32>,
    %c3 = arith.constant 3 : index
    %c0_23 = arith.constant 0 : index
    %c0_24 = arith.constant 0 : index
    %20 = vector.load %arg3[%c3, %c0_23, %c0_24] : memref<8x256x128xf32, #tpu.memory_space<vmem>>, vector<1x256x128xf32>
    %21 = vector.shape_cast %20 : vector<1x256x128xf32> to vector<256x128xf32>
    %cst_25 = arith.constant dense<0.000000e+00> : vector<16x128xf32>
    %22 = tpu.matmul %1, %21, %cst_25 {dimension_numbers = #tpu.dot_dimension_numbers<[1], [0], [0], [1], [0, 0, 1, 1], [], []>} : vector<16x256xf32>, vector<256x128xf32>, vector<16x128xf32> -> vector<16x128xf32>
    %c0_26 = arith.constant 0 : index
    %c3_27 = arith.constant 3 : index
    %c0_28 = arith.constant 0 : index
    %c0_29 = arith.constant 0 : index
    %23 = vector.load %arg4[%c0_26, %c3_27, %c0_28, %c0_29] : memref<1x8x16x128xf32, #tpu.memory_space<vmem>>, vector<1x1x16x128xf32>
    %24 = vector.shape_cast %23 : vector<1x1x16x128xf32> to vector<16x128xf32>
    %25 = vector.shape_cast %22 : vector<16x128xf32> to vector<1x1x16x128xf32>
    tpu.vector_store %arg4[%c0_26, %c3_27, %c0_28, %c0_29], %25 {strides = array<i32>} : memref<1x8x16x128xf32, #tpu.memory_space<vmem>>, vector<1x1x16x128xf32>,
    %c4 = arith.constant 4 : index
    %c0_30 = arith.constant 0 : index
    %c0_31 = arith.constant 0 : index
    %26 = vector.load %arg3[%c4, %c0_30, %c0_31] : memref<8x256x128xf32, #tpu.memory_space<vmem>>, vector<1x256x128xf32>
    %27 = vector.shape_cast %26 : vector<1x256x128xf32> to vector<256x128xf32>
    %cst_32 = arith.constant dense<0.000000e+00> : vector<16x128xf32>
    %28 = tpu.matmul %1, %27, %cst_32 {dimension_numbers = #tpu.dot_dimension_numbers<[1], [0], [0], [1], [0, 0, 1, 1], [], []>} : vector<16x256xf32>, vector<256x128xf32>, vector<16x128xf32> -> vector<16x128xf32>
    %c0_33 = arith.constant 0 : index
    %c4_34 = arith.constant 4 : index
    %c0_35 = arith.constant 0 : index
    %c0_36 = arith.constant 0 : index
    %29 = vector.load %arg4[%c0_33, %c4_34, %c0_35, %c0_36] : memref<1x8x16x128xf32, #tpu.memory_space<vmem>>, vector<1x1x16x128xf32>
    %30 = vector.shape_cast %29 : vector<1x1x16x128xf32> to vector<16x128xf32>
    %31 = vector.shape_cast %28 : vector<16x128xf32> to vector<1x1x16x128xf32>
    tpu.vector_store %arg4[%c0_33, %c4_34, %c0_35, %c0_36], %31 {strides = array<i32>} : memref<1x8x16x128xf32, #tpu.memory_space<vmem>>, vector<1x1x16x128xf32>,
    %c5 = arith.constant 5 : index
    %c0_37 = arith.constant 0 : index
    %c0_38 = arith.constant 0 : index
    %32 = vector.load %arg3[%c5, %c0_37, %c0_38] : memref<8x256x128xf32, #tpu.memory_space<vmem>>, vector<1x256x128xf32>
    %33 = vector.shape_cast %32 : vector<1x256x128xf32> to vector<256x128xf32>
    %cst_39 = arith.constant dense<0.000000e+00> : vector<16x128xf32>
    %34 = tpu.matmul %1, %33, %cst_39 {dimension_numbers = #tpu.dot_dimension_numbers<[1], [0], [0], [1], [0, 0, 1, 1], [], []>} : vector<16x256xf32>, vector<256x128xf32>, vector<16x128xf32> -> vector<16x128xf32>
    %c0_40 = arith.constant 0 : index
    %c5_41 = arith.constant 5 : index
    %c0_42 = arith.constant 0 : index
    %c0_43 = arith.constant 0 : index
    %35 = vector.load %arg4[%c0_40, %c5_41, %c0_42, %c0_43] : memref<1x8x16x128xf32, #tpu.memory_space<vmem>>, vector<1x1x16x128xf32>
    %36 = vector.shape_cast %35 : vector<1x1x16x128xf32> to vector<16x128xf32>
    %37 = vector.shape_cast %34 : vector<16x128xf32> to vector<1x1x16x128xf32>
    tpu.vector_store %arg4[%c0_40, %c5_41, %c0_42, %c0_43], %37 {strides = array<i32>} : memref<1x8x16x128xf32, #tpu.memory_space<vmem>>, vector<1x1x16x128xf32>,
    %c6 = arith.constant 6 : index
    %c0_44 = arith.constant 0 : index
    %c0_45 = arith.constant 0 : index
    %38 = vector.load %arg3[%c6, %c0_44, %c0_45] : memref<8x256x128xf32, #tpu.memory_space<vmem>>, vector<1x256x128xf32>
    %39 = vector.shape_cast %38 : vector<1x256x128xf32> to vector<256x128xf32>
    %cst_46 = arith.constant dense<0.000000e+00> : vector<16x128xf32>
    %40 = tpu.matmul %1, %39, %cst_46 {dimension_numbers = #tpu.dot_dimension_numbers<[1], [0], [0], [1], [0, 0, 1, 1], [], []>} : vector<16x256xf32>, vector<256x128xf32>, vector<16x128xf32> -> vector<16x128xf32>
    %c0_47 = arith.constant 0 : index
    %c6_48 = arith.constant 6 : index
    %c0_49 = arith.constant 0 : index
    %c0_50 = arith.constant 0 : index
    %41 = vector.load %arg4[%c0_47, %c6_48, %c0_49, %c0_50] : memref<1x8x16x128xf32, #tpu.memory_space<vmem>>, vector<1x1x16x128xf32>
    %42 = vector.shape_cast %41 : vector<1x1x16x128xf32> to vector<16x128xf32>
    %43 = vector.shape_cast %40 : vector<16x128xf32> to vector<1x1x16x128xf32>
    tpu.vector_store %arg4[%c0_47, %c6_48, %c0_49, %c0_50], %43 {strides = array<i32>} : memref<1x8x16x128xf32, #tpu.memory_space<vmem>>, vector<1x1x16x128xf32>,
    %c7 = arith.constant 7 : index
    %c0_51 = arith.constant 0 : index
    %c0_52 = arith.constant 0 : index
    %44 = vector.load %arg3[%c7, %c0_51, %c0_52] : memref<8x256x128xf32, #tpu.memory_space<vmem>>, vector<1x256x128xf32>
    %45 = vector.shape_cast %44 : vector<1x256x128xf32> to vector<256x128xf32>
    %cst_53 = arith.constant dense<0.000000e+00> : vector<16x128xf32>
    %46 = tpu.matmul %1, %45, %cst_53 {dimension_numbers = #tpu.dot_dimension_numbers<[1], [0], [0], [1], [0, 0, 1, 1], [], []>} : vector<16x256xf32>, vector<256x128xf32>, vector<16x128xf32> -> vector<16x128xf32>
    %c0_54 = arith.constant 0 : index
    %c7_55 = arith.constant 7 : index
    %c0_56 = arith.constant 0 : index
    %c0_57 = arith.constant 0 : index
    %47 = vector.load %arg4[%c0_54, %c7_55, %c0_56, %c0_57] : memref<1x8x16x128xf32, #tpu.memory_space<vmem>>, vector<1x1x16x128xf32>
    %48 = vector.shape_cast %47 : vector<1x1x16x128xf32> to vector<16x128xf32>
    %49 = vector.shape_cast %46 : vector<16x128xf32> to vector<1x1x16x128xf32>
    tpu.vector_store %arg4[%c0_54, %c7_55, %c0_56, %c0_57], %49 {strides = array<i32>} : memref<1x8x16x128xf32, #tpu.memory_space<vmem>>, vector<1x1x16x128xf32>,
    return
  }
  func.func @transform_0(%arg0: i32, %arg1: i32) -> (i32, i32, i32) {
    %c0_i32 = arith.constant 0 : i32
    %c0_i32_0 = arith.constant 0 : i32
    return %arg0, %arg1, %c0_i32 : i32, i32, i32
  }
  func.func @transform_1(%arg0: i32, %arg1: i32) -> (i32, i32, i32) {
    %c0_i32 = arith.constant 0 : i32
    %c0_i32_0 = arith.constant 0 : i32
    %c0_i32_1 = arith.constant 0 : i32
    %c0_i32_2 = arith.constant 0 : i32
    return %c0_i32, %c0_i32_0, %c0_i32_1 : i32, i32, i32
  }
  func.func @transform_2(%arg0: i32, %arg1: i32) -> (i32, i32, i32, i32) {
    %c0_i32 = arith.constant 0 : i32
    %c0_i32_0 = arith.constant 0 : i32
    %c0_i32_1 = arith.constant 0 : i32
    return %arg0, %c0_i32, %arg1, %c0_i32_0 : i32, i32, i32, i32
  }
}

</mosaic_0001>

<llo_original>
// kernel: tpu_custom_call.1
$region0: #{tpu_custom_call.1}
  #allocation0 [shape = 'u32[]', space=smem, size = 0x4, offset = 0x4, fixed_abs, tag = 'smem constant byte address 0x4 - core index']
  #allocation1 [shape = 'u32[72,128]{1,0:T(1,128)}', space=vmem, size = 0x9000, scoped, tag = 'internal scratch']
  %s0 = inlined_call_operand.hbm [shape: f32[2,16,256], index: 0, kind: input, shape index: {}]
  %s1 = inlined_call_operand.hbm [shape: f32[8,256,128], index: 1, kind: input, shape index: {}]
  %s2 = inlined_call_operand.hbm [shape: f32[2,8,16,128], index: 2, kind: output, shape index: {}]
  %s3 = sld [smem:[#allocation0]]
  $region49: #{tpu_custom_call.1} parent=0
    _
  %s5 = ssub.s32 1, %s3
  %s6 = scalar_select 0, %s5, %s3
  $region1: #{tpu_custom_call.1} parent=0
    #allocation2 [shape = 'u8[32768]{0}', space=vmem, size = 0x8000, scoped, tag = 'input window, operand 0']
    #allocation3 [shape = 's32[2]{0}', space=sflag, size = 0x8, scoped, tag = 'scoped memory for tpu_custom_call.1']
    #allocation4 [shape = 's32[2]{0}', space=sflag, size = 0x8, scoped, tag = 'scoped memory for tpu_custom_call.1']
    #allocation5 [shape = 'u8[1048576]{0}', space=vmem, size = 0x100000, scoped, tag = 'input window, operand 1, single buffered']
    #allocation6 [shape = 's32[1]{0}', space=sflag, size = 0x4, scoped, tag = 'scoped memory for tpu_custom_call.1']
    #allocation7 [shape = 'u8[131072]{0}', space=vmem, size = 0x20000, scoped, tag = 'output window, operand 0']
    %7 = vsyncpa [#allocation3], 0
    %s8 = scalar_lea.sflag [#allocation3], 1
    %9 = vsyncpa %s8, 0
    %10 = vsyncpa [#allocation6], 0
    %11 = vsyncpa [#allocation4], 0
    %s12 = scalar_lea.sflag [#allocation4], 1
    %13 = vsyncpa %s12, 0
    loop: start=0, step=1, limit=4
    $region2: #{tpu_custom_call.1} parent=1 // loop_pre_header
      _
    $region3: #{tpu_custom_call.1} parent=1 // loop_header
      %s15 = sphi 0, %s19
      %p16 = scmp.ge.s32.totalorder %s15, 4
      %s22 = sphi 0, %s34
      %s23 = sphi 0, %s30
      %s24 = sphi 0, %s22
      %s25 = sphi 0, %s23
      %s26 = sphi 0, %s24
      %s27 = sphi 0, %s25
      %s39 = sphi 0, %s41
      %s42 = sphi 0, %s39
      %s43 = sphi 0, %s42
      %s59 = sphi 0, %s43
      %s63 = sphi 0, %s63
      %s65 = sphi 0, %s63
      %s66 = sphi 0, %s65
      %s80 = sphi 0, %s66
      %s88 = sphi 0, %s90
      %s91 = sphi 0, %s88
      %s92 = sphi 0, %s91
      %s108 = sphi 0, %s92
    $region4: #{tpu_custom_call.1} parent=1 // loop_header_branch
      %18 = sbr.rel (%p16) target = $region8
    $region5: #{tpu_custom_call.1} parent=1 // loop_body
      %s20 = ssub.s32 %s15, 1
      %s21 = ssub.s32 %s15, 2
      %s28 = sadd.s32 1, %s23
      %p29 = scmp.ge.s32.totalorder %s28, 1
      %s30 = scalar_select %p29, 0, %s28
      %s31 = sadd.s32 1, %s22
      %s32 = scalar_select %p29, %s31, %s22
      %p33 = scmp.ge.s32.totalorder %s32, 2
      %s34 = scalar_select %p33, 0, %s32
      %s35 = ssub.s32 %s22, %s34
      %s36 = ssub.s32 %s23, %s30
      %s37 = sor.u32 %s35, %s36
      %p38 = scmp.eq.s32.totalorder %s37, 0
      %s40 = sadd.s32 %s39, 1
      %s41 = scalar_select %p38, %s39, %s40
      %p44 = pneg %p38
      %p45 = scmp.eq.s32.totalorder %s15, 1
      %p46 = por %p44, %p45
      %p47 = scmp.ne.s32.totalorder %s39, %s42
      %p48 = scmp.eq.s32.totalorder %s15, 0
      %p49 = por %p47, %p48
      %p50 = scmp.ne.s32.totalorder %s39, %s42
      %p51 = scmp.eq.s32.totalorder %s20, 1
      %p52 = por %p50, %p51
      %p53 = scmp.ne.s32.totalorder %s42, %s43
      %p54 = scmp.eq.s32.totalorder %s20, 0
      %p55 = por %p53, %p54
      %p56 = scmp.ne.s32.totalorder %s42, %s43
      %p57 = scmp.eq.s32.totalorder %s21, 1
      %p58 = por %p56, %p57
      %p60 = scmp.ne.s32.totalorder %s43, %s59
      %p61 = scmp.eq.s32.totalorder %s21, 0
      %p62 = por %p60, %p61
      %s64 = sadd.s32 %s63, 1
      %p67 = scmp.eq.s32.totalorder %s15, 1
      %p68 = scmp.ne.s32.totalorder %s63, %s65
      %p69 = scmp.eq.s32.totalorder %s15, 0
      %p70 = por %p68, %p69
      %p71 = scmp.ne.s32.totalorder %s63, %s65
      %p72 = scmp.eq.s32.totalorder %s20, 1
      %p73 = por %p71, %p72
      %p74 = scmp.ne.s32.totalorder %s65, %s66
      %p75 = scmp.eq.s32.totalorder %s20, 0
      %p76 = por %p74, %p75
      %p77 = scmp.ne.s32.totalorder %s65, %s66
      %p78 = scmp.eq.s32.totalorder %s21, 1
      %p79 = por %p77, %p78
      %p81 = scmp.ne.s32.totalorder %s66, %s80
      %p82 = scmp.eq.s32.totalorder %s21, 0
      %p83 = por %p81, %p82
      %s84 = ssub.s32 %s22, %s34
      %s85 = ssub.s32 %s23, %s30
      %s86 = sor.u32 %s84, %s85
      %p87 = scmp.eq.s32.totalorder %s86, 0
      %s89 = sadd.s32 %s88, 1
      %s90 = scalar_select %p87, %s88, %s89
      %p93 = pneg %p87
      %p94 = scmp.eq.s32.totalorder %s15, 1
      %p95 = por %p93, %p94
      %p96 = scmp.ne.s32.totalorder %s88, %s91
      %p97 = scmp.eq.s32.totalorder %s15, 0
      %p98 = por %p96, %p97
      %p99 = scmp.ne.s32.totalorder %s88, %s91
      %p100 = scmp.eq.s32.totalorder %s20, 1
      %p101 = por %p99, %p100
      %p102 = scmp.ne.s32.totalorder %s91, %s92
      %p103 = scmp.eq.s32.totalorder %s20, 0
      %p104 = por %p102, %p103
      %p105 = scmp.ne.s32.totalorder %s91, %s92
      %p106 = scmp.eq.s32.totalorder %s21, 1
      %p107 = por %p105, %p106
      %p109 = scmp.ne.s32.totalorder %s92, %s108
      %p110 = scmp.eq.s32.totalorder %s21, 0
      %p111 = por %p109, %p110
      %p112 = scmp.le.s32.totalorder 1, %s15
      %p113 = scmp.lt.s32.totalorder %s15, 3
      %p114 = pnand %p112, %p113
      %p115 = pneg %p114
      // Predicated region
      $region9: #{tpu_custom_call.1} parent=5 // pred_check
        _
      $region10: #{tpu_custom_call.1} parent=5 // pred_check_branch
        %117 = sbr.rel (%p114) target = $region12
      $region11: #{tpu_custom_call.1} parent=5 // pred_region
        %s118 = ssub.s32 %s15, 1
        // Predicated region
        $region13: #{tpu_custom_call.1} parent=11 // pred_check
          %p119 = pneg %p76
        $region14: #{tpu_custom_call.1} parent=11 // pred_check_branch
          %121 = sbr.rel (%p119) target = $region16
        $region15: #{tpu_custom_call.1} parent=11 // pred_region
          %123 = vsyncadd [#allocation6], 0
          %s124 = sshll.u32 %s1, 4
          %s125 = int_to_ptr.hbm [resolvable:$true] %s124
          %s126 = sshll.u32 [#allocation5], 4
          %s127 = int_to_ptr.vmem [resolvable:$true] %s126
          %132 = dma.hbm_to_vmem [thread:$0]  %s125, 32768, %s127, [#allocation6], 128, 128, 8
        $region16: #{tpu_custom_call.1} parent=11 // pred_fallthru
          _
      $region12: #{tpu_custom_call.1} parent=5 // pred_fallthru
        _
      %p133 = scmp.lt.s32.totalorder %s15, 2
      // Predicated region
      $region17: #{tpu_custom_call.1} parent=5 // pred_check
        %p134 = pneg %p133
      $region18: #{tpu_custom_call.1} parent=5 // pred_check_branch
        %136 = sbr.rel (%p134) target = $region20
      $region19: #{tpu_custom_call.1} parent=5 // pred_region
        // Predicated region
        $region21: #{tpu_custom_call.1} parent=19 // pred_check
          %p137 = pneg %p49
        $region22: #{tpu_custom_call.1} parent=19 // pred_check_branch
          %139 = sbr.rel (%p137) target = $region24
        $region23: #{tpu_custom_call.1} parent=19 // pred_region
          %s140 = sand.u32 %s39, 1
          %s141 = scalar_lea.sflag [#allocation3], %s140
          %s142 = sand.u32 %s39, 1
          %s143 = smul.addr %s142, 32
          %s144 = scalar_lea.vmem [#allocation2], %s143
          %s145 = smul.u32 2, %s23
          %147 = vsyncadd %s141, 0
          %s148 = smul.addr %s145, 2
          %s149 = smul.addr %s22, 4
          %s150 = sadd.s32 %s148, %s149
          %s151 = smul.addr %s150, 8
          %s152 = scalar_lea.hbm %s0, %s151
          %s153 = sshll.u32 %s152, 4
          %s154 = int_to_ptr.hbm [resolvable:$true] %s153
          %s155 = sshll.u32 %s144, 4
          %s156 = int_to_ptr.vmem [resolvable:$true] %s155
          %161 = dma.hbm_to_vmem [thread:$0]  %s154, 512, %s156, %s141, 256, 256, 16
        $region24: #{tpu_custom_call.1} parent=19 // pred_fallthru
          _
      $region20: #{tpu_custom_call.1} parent=5 // pred_fallthru
        _
      %p162 = scmp.le.s32.totalorder 1, %s15
      %p163 = scmp.lt.s32.totalorder %s15, 3
      %p164 = pnand %p162, %p163
      %p165 = pneg %p164
      // Predicated region
      $region25: #{tpu_custom_call.1} parent=5 // pred_check
        _
      $region26: #{tpu_custom_call.1} parent=5 // pred_check_branch
        %167 = sbr.rel (%p164) target = $region28
      $region27: #{tpu_custom_call.1} parent=5 // pred_region
        %s168 = ssub.s32 %s15, 1
        %s169 = sand.u32 %s42, 1
        %s170 = scalar_lea.sflag [#allocation3], %s169
        %s171 = sand.u32 %s42, 1
        %s172 = smul.addr %s171, 32
        %s173 = scalar_lea.vmem [#allocation2], %s172
        // Predicated region
        $region29: #{tpu_custom_call.1} parent=27 // pred_check
          %p174 = pneg %p55
        $region30: #{tpu_custom_call.1} parent=27 // pred_check_branch
          %176 = sbr.rel (%p174) target = $region32
        $region31: #{tpu_custom_call.1} parent=27 // pred_region
          %178 = dma.done %s170, 512
        $region32: #{tpu_custom_call.1} parent=27 // pred_fallthru
          _
        // Predicated region
        $region33: #{tpu_custom_call.1} parent=27 // pred_check
          %p179 = pneg %p76
        $region34: #{tpu_custom_call.1} parent=27 // pred_check_branch
          %181 = sbr.rel (%p179) target = $region36
        $region35: #{tpu_custom_call.1} parent=27 // pred_region
          %183 = dma.done [#allocation6], 32768
        $region36: #{tpu_custom_call.1} parent=27 // pred_fallthru
          _
        %s184 = sand.u32 %s42, 1
        %s185 = scalar_lea.sflag [#allocation3], %s184
        %s186 = sand.u32 %s42, 1
        %s187 = smul.addr %s186, 32
        %s188 = scalar_lea.vmem [#allocation2], %s187
        %p189 = pneg %p55
        %p190 = pneg %p52
        %p191 = pneg %p76
        %p192 = pneg %p73
        %p193 = pneg %p104
        %p194 = pneg %p101
        %s195 = sand.u32 %s91, 1
        %s196 = scalar_lea.sflag [#allocation4], %s195
        %s197 = sand.u32 %s91, 1
        %s198 = smul.addr %s197, 128
        %s199 = scalar_lea.vmem [#allocation7], %s198
        %s200 = smul.u32 2, %s25
        %s201 = smul.u32 2, %s25
        %v202 = vld [vmem:[%s173] sm:$0xff]
        %v203 = vld [vmem:[%s173 + $0x8] sm:$0xff]
        %v204 = vld [vmem:[%s173 + $0x10] sm:$0xff]
        %v205 = vld [vmem:[%s173 + $0x18] sm:$0xff]
        %v206 = vld [vmem:[#allocation5] sm:$0xff]
        %v207 = vld [vmem:[#allocation5 + $0x8] sm:$0xff]
        %v208 = vld [vmem:[#allocation5 + $0x10] sm:$0xff]
        %v209 = vld [vmem:[#allocation5 + $0x18] sm:$0xff]
        %v210 = vld [vmem:[#allocation5 + $0x20] sm:$0xff]
        %v211 = vld [vmem:[#allocation5 + $0x28] sm:$0xff]
        %v212 = vld [vmem:[#allocation5 + $0x30] sm:$0xff]
        %v213 = vld [vmem:[#allocation5 + $0x38] sm:$0xff]
        %v214 = vld [vmem:[#allocation5 + $0x40] sm:$0xff]
        %v215 = vld [vmem:[#allocation5 + $0x48] sm:$0xff]
        %v216 = vld [vmem:[#allocation5 + $0x50] sm:$0xff]
        %v217 = vld [vmem:[#allocation5 + $0x58] sm:$0xff]
        %v218 = vld [vmem:[#allocation5 + $0x60] sm:$0xff]
        %v219 = vld [vmem:[#allocation5 + $0x68] sm:$0xff]
        %v220 = vld [vmem:[#allocation5 + $0x70] sm:$0xff]
        %v221 = vld [vmem:[#allocation5 + $0x78] sm:$0xff]
        %v222 = vld [vmem:[#allocation5 + $0x80] sm:$0xff]
        %v223 = vld [vmem:[#allocation5 + $0x88] sm:$0xff]
        %v224 = vld [vmem:[#allocation5 + $0x90] sm:$0xff]
        %v225 = vld [vmem:[#allocation5 + $0x98] sm:$0xff]
        %v226 = vld [vmem:[#allocation5 + $0xa0] sm:$0xff]
        %v227 = vld [vmem:[#allocation5 + $0xa8] sm:$0xff]
        %v228 = vld [vmem:[#allocation5 + $0xb0] sm:$0xff]
        %v229 = vld [vmem:[#allocation5 + $0xb8] sm:$0xff]
        %v230 = vld [vmem:[#allocation5 + $0xc0] sm:$0xff]
        %v231 = vld [vmem:[#allocation5 + $0xc8] sm:$0xff]
        %v232 = vld [vmem:[#allocation5 + $0xd0] sm:$0xff]
        %v233 = vld [vmem:[#allocation5 + $0xd8] sm:$0xff]
        %v234 = vld [vmem:[#allocation5 + $0xe0] sm:$0xff]
        %v235 = vld [vmem:[#allocation5 + $0xe8] sm:$0xff]
        %v236 = vld [vmem:[#allocation5 + $0xf0] sm:$0xff]
        %v237 = vld [vmem:[#allocation5 + $0xf8] sm:$0xff]
        %238 = vmatpush.msra.mxu0 %v221
        %239 = vmatpush.msra.mxu0 %v220
        %240 = vmatpush.msra.mxu0 %v219
        %241 = vmatpush.msra.mxu0 %v218
        %242 = vmatpush.msra.mxu0 %v217
        %243 = vmatpush.msra.mxu0 %v216
        %244 = vmatpush.msra.mxu0 %v215
        %245 = vmatpush.msra.mxu0 %v214
        %246 = vmatpush.msra.mxu0 %v213
        %247 = vmatpush.msra.mxu0 %v212
        %248 = vmatpush.msra.mxu0 %v211
        %249 = vmatpush.msra.mxu0 %v210
        %250 = vmatpush.msra.mxu0 %v209
        %251 = vmatpush.msra.mxu0 %v208
        %252 = vmatpush.msra.mxu0 %v207
        %253 = vmatpush.msra.mxu0 %v206
        %254 = vmatmul.f32.gmra.mxu0 %v202
        %v255 = vpop.f32.mrf.mxu0
        %v256 = vadd.f32 0.0, %v255
        %257 = vmatmul.f32.gmra.mxu0 %v204
        %v258 = vpop.f32.mrf.mxu0
        %v259 = vadd.f32 0.0, %v258
        %260 = vdwg.mxu0
        %261 = vmatpush.msra.mxu0 %v237
        %262 = vmatpush.msra.mxu0 %v236
        %263 = vmatpush.msra.mxu0 %v235
        %264 = vmatpush.msra.mxu0 %v234
        %265 = vmatpush.msra.mxu0 %v233
        %266 = vmatpush.msra.mxu0 %v232
        %267 = vmatpush.msra.mxu0 %v231
        %268 = vmatpush.msra.mxu0 %v230
        %269 = vmatpush.msra.mxu0 %v229
        %270 = vmatpush.msra.mxu0 %v228
        %271 = vmatpush.msra.mxu0 %v227
        %272 = vmatpush.msra.mxu0 %v226
        %273 = vmatpush.msra.mxu0 %v225
        %274 = vmatpush.msra.mxu0 %v224
        %275 = vmatpush.msra.mxu0 %v223
        %276 = vmatpush.msra.mxu0 %v222
        %277 = vmatmul.f32.gmra.mxu0 %v203
        %v278 = vpop.f32.mrf.mxu0
        %v279 = vadd.f32 %v256, %v278
        %280 = vmatmul.f32.gmra.mxu0 %v205
        %v281 = vpop.f32.mrf.mxu0
        %v282 = vadd.f32 %v259, %v281
        %283 = vdwg.mxu0
        %284 = vst [vmem:[%s199] sm:$0xff] %v279
        %285 = vst [vmem:[%s199 + $0x8] sm:$0xff] %v282
        %s286 = scalar_lea.vmem [#allocation5], 256
        %v287 = vld [vmem:[%s286] sm:$0xff]
        %v288 = vld [vmem:[%s286 + $0x8] sm:$0xff]
        %v289 = vld [vmem:[%s286 + $0x10] sm:$0xff]
        %v290 = vld [vmem:[%s286 + $0x18] sm:$0xff]
        %v291 = vld [vmem:[%s286 + $0x20] sm:$0xff]
        %v292 = vld [vmem:[%s286 + $0x28] sm:$0xff]
        %v293 = vld [vmem:[%s286 + $0x30] sm:$0xff]
        %v294 = vld [vmem:[%s286 + $0x38] sm:$0xff]
        %v295 = vld [vmem:[%s286 + $0x40] sm:$0xff]
        %v296 = vld [vmem:[%s286 + $0x48] sm:$0xff]
        %v297 = vld [vmem:[%s286 + $0x50] sm:$0xff]
        %v298 = vld [vmem:[%s286 + $0x58] sm:$0xff]
        %v299 = vld [vmem:[%s286 + $0x60] sm:$0xff]
        %v300 = vld [vmem:[%s286 + $0x68] sm:$0xff]
        %v301 = vld [vmem:[%s286 + $0x70] sm:$0xff]
        %v302 = vld [vmem:[%s286 + $0x78] sm:$0xff]
        %v303 = vld [vmem:[%s286 + $0x80] sm:$0xff]
        %v304 = vld [vmem:[%s286 + $0x88] sm:$0xff]
        %v305 = vld [vmem:[%s286 + $0x90] sm:$0xff]
        %v306 = vld [vmem:[%s286 + $0x98] sm:$0xff]
        %v307 = vld [vmem:[%s286 + $0xa0] sm:$0xff]
        %v308 = vld [vmem:[%s286 + $0xa8] sm:$0xff]
        %v309 = vld [vmem:[%s286 + $0xb0] sm:$0xff]
        %v310 = vld [vmem:[%s286 + $0xb8] sm:$0xff]
        %v311 = vld [vmem:[%s286 + $0xc0] sm:$0xff]
        %v312 = vld [vmem:[%s286 + $0xc8] sm:$0xff]
        %v313 = vld [vmem:[%s286 + $0xd0] sm:$0xff]
        %v314 = vld [vmem:[%s286 + $0xd8] sm:$0xff]
        %v315 = vld [vmem:[%s286 + $0xe0] sm:$0xff]
        %v316 = vld [vmem:[%s286 + $0xe8] sm:$0xff]
        %v317 = vld [vmem:[%s286 + $0xf0] sm:$0xff]
        %v318 = vld [vmem:[%s286 + $0xf8] sm:$0xff]
        %319 = vmatpush.msra.mxu0 %v302
        %320 = vmatpush.msra.mxu0 %v301
        %321 = vmatpush.msra.mxu0 %v300
        %322 = vmatpush.msra.mxu0 %v299
        %323 = vmatpush.msra.mxu0 %v298
        %324 = vmatpush.msra.mxu0 %v297
        %325 = vmatpush.msra.mxu0 %v296
        %326 = vmatpush.msra.mxu0 %v295
        %327 = vmatpush.msra.mxu0 %v294
        %328 = vmatpush.msra.mxu0 %v293
        %329 = vmatpush.msra.mxu0 %v292
        %330 = vmatpush.msra.mxu0 %v291
        %331 = vmatpush.msra.mxu0 %v290
        %332 = vmatpush.msra.mxu0 %v289
        %333 = vmatpush.msra.mxu0 %v288
        %334 = vmatpush.msra.mxu0 %v287
        %335 = vmatmul.f32.gmra.mxu0 %v202
        %v336 = vpop.f32.mrf.mxu0
        %v337 = vadd.f32 0.0, %v336
        %338 = vmatmul.f32.gmra.mxu0 %v204
        %v339 = vpop.f32.mrf.mxu0
        %v340 = vadd.f32 0.0, %v339
        %341 = vdwg.mxu0
        %342 = vmatpush.msra.mxu0 %v318
        %343 = vmatpush.msra.mxu0 %v317
        %344 = vmatpush.msra.mxu0 %v316
        %345 = vmatpush.msra.mxu0 %v315
        %346 = vmatpush.msra.mxu0 %v314
        %347 = vmatpush.msra.mxu0 %v313
        %348 = vmatpush.msra.mxu0 %v312
        %349 = vmatpush.msra.mxu0 %v311
        %350 = vmatpush.msra.mxu0 %v310
        %351 = vmatpush.msra.mxu0 %v309
        %352 = vmatpush.msra.mxu0 %v308
        %353 = vmatpush.msra.mxu0 %v307
        %354 = vmatpush.msra.mxu0 %v306
        %355 = vmatpush.msra.mxu0 %v305
        %356 = vmatpush.msra.mxu0 %v304
        %357 = vmatpush.msra.mxu0 %v303
        %358 = vmatmul.f32.gmra.mxu0 %v203
        %v359 = vpop.f32.mrf.mxu0
        %v360 = vadd.f32 %v337, %v359
        %361 = vmatmul.f32.gmra.mxu0 %v205
        %v362 = vpop.f32.mrf.mxu0
        %v363 = vadd.f32 %v340, %v362
        %364 = vdwg.mxu0
        %s365 = scalar_lea.vmem %s199, 16 [#allocation7]
        %366 = vst [vmem:[%s365] sm:$0xff] %v360
        %367 = vst [vmem:[%s365 + $0x8] sm:$0xff] %v363
        %s368 = scalar_lea.vmem [#allocation5], 512
        %v369 = vld [vmem:[%s368] sm:$0xff]
        %v370 = vld [vmem:[%s368 + $0x8] sm:$0xff]
        %v371 = vld [vmem:[%s368 + $0x10] sm:$0xff]
        %v372 = vld [vmem:[%s368 + $0x18] sm:$0xff]
        %v373 = vld [vmem:[%s368 + $0x20] sm:$0xff]
        %v374 = vld [vmem:[%s368 + $0x28] sm:$0xff]
        %v375 = vld [vmem:[%s368 + $0x30] sm:$0xff]
        %v376 = vld [vmem:[%s368 + $0x38] sm:$0xff]
        %v377 = vld [vmem:[%s368 + $0x40] sm:$0xff]
        %v378 = vld [vmem:[%s368 + $0x48] sm:$0xff]
        %v379 = vld [vmem:[%s368 + $0x50] sm:$0xff]
        %v380 = vld [vmem:[%s368 + $0x58] sm:$0xff]
        %v381 = vld [vmem:[%s368 + $0x60] sm:$0xff]
        %v382 = vld [vmem:[%s368 + $0x68] sm:$0xff]
        %v383 = vld [vmem:[%s368 + $0x70] sm:$0xff]
        %v384 = vld [vmem:[%s368 + $0x78] sm:$0xff]
        %v385 = vld [vmem:[%s368 + $0x80] sm:$0xff]
        %v386 = vld [vmem:[%s368 + $0x88] sm:$0xff]
        %v387 = vld [vmem:[%s368 + $0x90] sm:$0xff]
        %v388 = vld [vmem:[%s368 + $0x98] sm:$0xff]
        %v389 = vld [vmem:[%s368 + $0xa0] sm:$0xff]
        %v390 = vld [vmem:[%s368 + $0xa8] sm:$0xff]
        %v391 = vld [vmem:[%s368 + $0xb0] sm:$0xff]
        %v392 = vld [vmem:[%s368 + $0xb8] sm:$0xff]
        %v393 = vld [vmem:[%s368 + $0xc0] sm:$0xff]
        %v394 = vld [vmem:[%s368 + $0xc8] sm:$0xff]
        %v395 = vld [vmem:[%s368 + $0xd0] sm:$0xff]
        %v396 = vld [vmem:[%s368 + $0xd8] sm:$0xff]
        %v397 = vld [vmem:[%s368 + $0xe0] sm:$0xff]
        %v398 = vld [vmem:[%s368 + $0xe8] sm:$0xff]
        %v399 = vld [vmem:[%s368 + $0xf0] sm:$0xff]
        %v400 = vld [vmem:[%s368 + $0xf8] sm:$0xff]
        %401 = vmatpush.msra.mxu0 %v384
        %402 = vmatpush.msra.mxu0 %v383
        %403 = vmatpush.msra.mxu0 %v382
        %404 = vmatpush.msra.mxu0 %v381
        %405 = vmatpush.msra.mxu0 %v380
        %406 = vmatpush.msra.mxu0 %v379
        %407 = vmatpush.msra.mxu0 %v378
        %408 = vmatpush.msra.mxu0 %v377
        %409 = vmatpush.msra.mxu0 %v376
        %410 = vmatpush.msra.mxu0 %v375
        %411 = vmatpush.msra.mxu0 %v374
        %412 = vmatpush.msra.mxu0 %v373
        %413 = vmatpush.msra.mxu0 %v372
        %414 = vmatpush.msra.mxu0 %v371
        %415 = vmatpush.msra.mxu0 %v370
        %416 = vmatpush.msra.mxu0 %v369
        %417 = vmatmul.f32.gmra.mxu0 %v202
        %v418 = vpop.f32.mrf.mxu0
        %v419 = vadd.f32 0.0, %v418
        %420 = vmatmul.f32.gmra.mxu0 %v204
        %v421 = vpop.f32.mrf.mxu0
        %v422 = vadd.f32 0.0, %v421
        %423 = vdwg.mxu0
        %424 = vmatpush.msra.mxu0 %v400
        %425 = vmatpush.msra.mxu0 %v399
        %426 = vmatpush.msra.mxu0 %v398
        %427 = vmatpush.msra.mxu0 %v397
        %428 = vmatpush.msra.mxu0 %v396
        %429 = vmatpush.msra.mxu0 %v395
        %430 = vmatpush.msra.mxu0 %v394
        %431 = vmatpush.msra.mxu0 %v393
        %432 = vmatpush.msra.mxu0 %v392
        %433 = vmatpush.msra.mxu0 %v391
        %434 = vmatpush.msra.mxu0 %v390
        %435 = vmatpush.msra.mxu0 %v389
        %436 = vmatpush.msra.mxu0 %v388
        %437 = vmatpush.msra.mxu0 %v387
        %438 = vmatpush.msra.mxu0 %v386
        %439 = vmatpush.msra.mxu0 %v385
        %440 = vmatmul.f32.gmra.mxu0 %v203
        %v441 = vpop.f32.mrf.mxu0
        %v442 = vadd.f32 %v419, %v441
        %443 = vmatmul.f32.gmra.mxu0 %v205
        %v444 = vpop.f32.mrf.mxu0
        %v445 = vadd.f32 %v422, %v444
        %446 = vdwg.mxu0
        %s447 = scalar_lea.vmem %s199, 32 [#allocation7]
        %448 = vst [vmem:[%s447] sm:$0xff] %v442
        %449 = vst [vmem:[%s447 + $0x8] sm:$0xff] %v445
        %s450 = scalar_lea.vmem [#allocation5], 768
        %v451 = vld [vmem:[%s450] sm:$0xff]
        %v452 = vld [vmem:[%s450 + $0x8] sm:$0xff]
        %v453 = vld [vmem:[%s450 + $0x10] sm:$0xff]
        %v454 = vld [vmem:[%s450 + $0x18] sm:$0xff]
        %v455 = vld [vmem:[%s450 + $0x20] sm:$0xff]
        %v456 = vld [vmem:[%s450 + $0x28] sm:$0xff]
        %v457 = vld [vmem:[%s450 + $0x30] sm:$0xff]
        %v458 = vld [vmem:[%s450 + $0x38] sm:$0xff]
        %v459 = vld [vmem:[%s450 + $0x40] sm:$0xff]
        %v460 = vld [vmem:[%s450 + $0x48] sm:$0xff]
        %v461 = vld [vmem:[%s450 + $0x50] sm:$0xff]
        %v462 = vld [vmem:[%s450 + $0x58] sm:$0xff]
        %v463 = vld [vmem:[%s450 + $0x60] sm:$0xff]
        %v464 = vld [vmem:[%s450 + $0x68] sm:$0xff]
        %v465 = vld [vmem:[%s450 + $0x70] sm:$0xff]
        %v466 = vld [vmem:[%s450 + $0x78] sm:$0xff]
        %v467 = vld [vmem:[%s450 + $0x80] sm:$0xff]
        %v468 = vld [vmem:[%s450 + $0x88] sm:$0xff]
        %v469 = vld [vmem:[%s450 + $0x90] sm:$0xff]
        %v470 = vld [vmem:[%s450 + $0x98] sm:$0xff]
        %v471 = vld [vmem:[%s450 + $0xa0] sm:$0xff]
        %v472 = vld [vmem:[%s450 + $0xa8] sm:$0xff]
        %v473 = vld [vmem:[%s450 + $0xb0] sm:$0xff]
        %v474 = vld [vmem:[%s450 + $0xb8] sm:$0xff]
        %v475 = vld [vmem:[%s450 + $0xc0] sm:$0xff]
        %v476 = vld [vmem:[%s450 + $0xc8] sm:$0xff]
        %v477 = vld [vmem:[%s450 + $0xd0] sm:$0xff]
        %v478 = vld [vmem:[%s450 + $0xd8] sm:$0xff]
        %v479 = vld [vmem:[%s450 + $0xe0] sm:$0xff]
        %v480 = vld [vmem:[%s450 + $0xe8] sm:$0xff]
        %v481 = vld [vmem:[%s450 + $0xf0] sm:$0xff]
        %v482 = vld [vmem:[%s450 + $0xf8] sm:$0xff]
        %483 = vmatpush.msra.mxu0 %v466
        %484 = vmatpush.msra.mxu0 %v465
        %485 = vmatpush.msra.mxu0 %v464
        %486 = vmatpush.msra.mxu0 %v463
        %487 = vmatpush.msra.mxu0 %v462
        %488 = vmatpush.msra.mxu0 %v461
        %489 = vmatpush.msra.mxu0 %v460
        %490 = vmatpush.msra.mxu0 %v459
        %491 = vmatpush.msra.mxu0 %v458
        %492 = vmatpush.msra.mxu0 %v457
        %493 = vmatpush.msra.mxu0 %v456
        %494 = vmatpush.msra.mxu0 %v455
        %495 = vmatpush.msra.mxu0 %v454
        %496 = vmatpush.msra.mxu0 %v453
        %497 = vmatpush.msra.mxu0 %v452
        %498 = vmatpush.msra.mxu0 %v451
        %499 = vmatmul.f32.gmra.mxu0 %v202
        %v500 = vpop.f32.mrf.mxu0
        %v501 = vadd.f32 0.0, %v500
        %502 = vmatmul.f32.gmra.mxu0 %v204
        %v503 = vpop.f32.mrf.mxu0
        %v504 = vadd.f32 0.0, %v503
        %505 = vdwg.mxu0
        %506 = vmatpush.msra.mxu0 %v482
        %507 = vmatpush.msra.mxu0 %v481
        %508 = vmatpush.msra.mxu0 %v480
        %509 = vmatpush.msra.mxu0 %v479
        %510 = vmatpush.msra.mxu0 %v478
        %511 = vmatpush.msra.mxu0 %v477
        %512 = vmatpush.msra.mxu0 %v476
        %513 = vmatpush.msra.mxu0 %v475
        %514 = vmatpush.msra.mxu0 %v474
        %515 = vmatpush.msra.mxu0 %v473
        %516 = vmatpush.msra.mxu0 %v472
        %517 = vmatpush.msra.mxu0 %v471
        %518 = vmatpush.msra.mxu0 %v470
        %519 = vmatpush.msra.mxu0 %v469
        %520 = vmatpush.msra.mxu0 %v468
        %521 = vmatpush.msra.mxu0 %v467
        %522 = vmatmul.f32.gmra.mxu0 %v203
        %v523 = vpop.f32.mrf.mxu0
        %v524 = vadd.f32 %v501, %v523
        %525 = vmatmul.f32.gmra.mxu0 %v205
        %v526 = vpop.f32.mrf.mxu0
        %v527 = vadd.f32 %v504, %v526
        %528 = vdwg.mxu0
        %s529 = scalar_lea.vmem %s199, 48 [#allocation7]
        %530 = vst [vmem:[%s529] sm:$0xff] %v524
        %531 = vst [vmem:[%s529 + $0x8] sm:$0xff] %v527
        %s532 = scalar_lea.vmem [#allocation5], 1024
        %v533 = vld [vmem:[%s532] sm:$0xff]
        %v534 = vld [vmem:[%s532 + $0x8] sm:$0xff]
        %v535 = vld [vmem:[%s532 + $0x10] sm:$0xff]
        %v536 = vld [vmem:[%s532 + $0x18] sm:$0xff]
        %v537 = vld [vmem:[%s532 + $0x20] sm:$0xff]
        %v538 = vld [vmem:[%s532 + $0x28] sm:$0xff]
        %v539 = vld [vmem:[%s532 + $0x30] sm:$0xff]
        %v540 = vld [vmem:[%s532 + $0x38] sm:$0xff]
        %v541 = vld [vmem:[%s532 + $0x40] sm:$0xff]
        %v542 = vld [vmem:[%s532 + $0x48] sm:$0xff]
        %v543 = vld [vmem:[%s532 + $0x50] sm:$0xff]
        %v544 = vld [vmem:[%s532 + $0x58] sm:$0xff]
        %v545 = vld [vmem:[%s532 + $0x60] sm:$0xff]
        %v546 = vld [vmem:[%s532 + $0x68] sm:$0xff]
        %v547 = vld [vmem:[%s532 + $0x70] sm:$0xff]
        %v548 = vld [vmem:[%s532 + $0x78] sm:$0xff]
        %v549 = vld [vmem:[%s532 + $0x80] sm:$0xff]
        %v550 = vld [vmem:[%s532 + $0x88] sm:$0xff]
        %v551 = vld [vmem:[%s532 + $0x90] sm:$0xff]
        %v552 = vld [vmem:[%s532 + $0x98] sm:$0xff]
        %v553 = vld [vmem:[%s532 + $0xa0] sm:$0xff]
        %v554 = vld [vmem:[%s532 + $0xa8] sm:$0xff]
        %v555 = vld [vmem:[%s532 + $0xb0] sm:$0xff]
        %v556 = vld [vmem:[%s532 + $0xb8] sm:$0xff]
        %v557 = vld [vmem:[%s532 + $0xc0] sm:$0xff]
        %v558 = vld [vmem:[%s532 + $0xc8] sm:$0xff]
        %v559 = vld [vmem:[%s532 + $0xd0] sm:$0xff]
        %v560 = vld [vmem:[%s532 + $0xd8] sm:$0xff]
        %v561 = vld [vmem:[%s532 + $0xe0] sm:$0xff]
        %v562 = vld [vmem:[%s532 + $0xe8] sm:$0xff]
        %v563 = vld [vmem:[%s532 + $0xf0] sm:$0xff]
        %v564 = vld [vmem:[%s532 + $0xf8] sm:$0xff]
        %565 = vmatpush.msra.mxu0 %v548
        %566 = vmatpush.msra.mxu0 %v547
        %567 = vmatpush.msra.mxu0 %v546
        %568 = vmatpush.msra.mxu0 %v545
        %569 = vmatpush.msra.mxu0 %v544
        %570 = vmatpush.msra.mxu0 %v543
        %571 = vmatpush.msra.mxu0 %v542
        %572 = vmatpush.msra.mxu0 %v541
        %573 = vmatpush.msra.mxu0 %v540
        %574 = vmatpush.msra.mxu0 %v539
        %575 = vmatpush.msra.mxu0 %v538
        %576 = vmatpush.msra.mxu0 %v537
        %577 = vmatpush.msra.mxu0 %v536
        %578 = vmatpush.msra.mxu0 %v535
        %579 = vmatpush.msra.mxu0 %v534
        %580 = vmatpush.msra.mxu0 %v533
        %581 = vmatmul.f32.gmra.mxu0 %v202
        %v582 = vpop.f32.mrf.mxu0
        %v583 = vadd.f32 0.0, %v582
        %584 = vmatmul.f32.gmra.mxu0 %v204
        %v585 = vpop.f32.mrf.mxu0
        %v586 = vadd.f32 0.0, %v585
        %587 = vdwg.mxu0
        %588 = vmatpush.msra.mxu0 %v564
        %589 = vmatpush.msra.mxu0 %v563
        %590 = vmatpush.msra.mxu0 %v562
        %591 = vmatpush.msra.mxu0 %v561
        %592 = vmatpush.msra.mxu0 %v560
        %593 = vmatpush.msra.mxu0 %v559
        %594 = vmatpush.msra.mxu0 %v558
        %595 = vmatpush.msra.mxu0 %v557
        %596 = vmatpush.msra.mxu0 %v556
        %597 = vmatpush.msra.mxu0 %v555
        %598 = vmatpush.msra.mxu0 %v554
        %599 = vmatpush.msra.mxu0 %v553
        %600 = vmatpush.msra.mxu0 %v552
        %601 = vmatpush.msra.mxu0 %v551
        %602 = vmatpush.msra.mxu0 %v550
        %603 = vmatpush.msra.mxu0 %v549
        %604 = vmatmul.f32.gmra.mxu0 %v203
        %v605 = vpop.f32.mrf.mxu0
        %v606 = vadd.f32 %v583, %v605
        %607 = vmatmul.f32.gmra.mxu0 %v205
        %v608 = vpop.f32.mrf.mxu0
        %v609 = vadd.f32 %v586, %v608
        %610 = vdwg.mxu0
        %s611 = scalar_lea.vmem %s199, 64 [#allocation7]
        %612 = vst [vmem:[%s611] sm:$0xff] %v606
        %613 = vst [vmem:[%s611 + $0x8] sm:$0xff] %v609
        %s614 = scalar_lea.vmem [#allocation5], 1280
        %v615 = vld [vmem:[%s614] sm:$0xff]
        %v616 = vld [vmem:[%s614 + $0x8] sm:$0xff]
        %v617 = vld [vmem:[%s614 + $0x10] sm:$0xff]
        %v618 = vld [vmem:[%s614 + $0x18] sm:$0xff]
        %v619 = vld [vmem:[%s614 + $0x20] sm:$0xff]
        %v620 = vld [vmem:[%s614 + $0x28] sm:$0xff]
        %v621 = vld [vmem:[%s614 + $0x30] sm:$0xff]
        %v622 = vld [vmem:[%s614 + $0x38] sm:$0xff]
        %v623 = vld [vmem:[%s614 + $0x40] sm:$0xff]
        %v624 = vld [vmem:[%s614 + $0x48] sm:$0xff]
        %v625 = vld [vmem:[%s614 + $0x50] sm:$0xff]
        %v626 = vld [vmem:[%s614 + $0x58] sm:$0xff]
        %v627 = vld [vmem:[%s614 + $0x60] sm:$0xff]
        %v628 = vld [vmem:[%s614 + $0x68] sm:$0xff]
        %v629 = vld [vmem:[%s614 + $0x70] sm:$0xff]
        %v630 = vld [vmem:[%s614 + $0x78] sm:$0xff]
        %v631 = vld [vmem:[%s614 + $0x80] sm:$0xff]
        %v632 = vld [vmem:[%s614 + $0x88] sm:$0xff]
        %v633 = vld [vmem:[%s614 + $0x90] sm:$0xff]
        %v634 = vld [vmem:[%s614 + $0x98] sm:$0xff]
        %v635 = vld [vmem:[%s614 + $0xa0] sm:$0xff]
        %v636 = vld [vmem:[%s614 + $0xa8] sm:$0xff]
        %v637 = vld [vmem:[%s614 + $0xb0] sm:$0xff]
        %v638 = vld [vmem:[%s614 + $0xb8] sm:$0xff]
        %v639 = vld [vmem:[%s614 + $0xc0] sm:$0xff]
        %v640 = vld [vmem:[%s614 + $0xc8] sm:$0xff]
        %v641 = vld [vmem:[%s614 + $0xd0] sm:$0xff]
        %v642 = vld [vmem:[%s614 + $0xd8] sm:$0xff]
        %v643 = vld [vmem:[%s614 + $0xe0] sm:$0xff]
        %v644 = vld [vmem:[%s614 + $0xe8] sm:$0xff]
        %v645 = vld [vmem:[%s614 + $0xf0] sm:$0xff]
        %v646 = vld [vmem:[%s614 + $0xf8] sm:$0xff]
        %647 = vmatpush.msra.mxu0 %v630
        %648 = vmatpush.msra.mxu0 %v629
        %649 = vmatpush.msra.mxu0 %v628
        %650 = vmatpush.msra.mxu0 %v627
        %651 = vmatpush.msra.mxu0 %v626
        %652 = vmatpush.msra.mxu0 %v625
        %653 = vmatpush.msra.mxu0 %v624
        %654 = vmatpush.msra.mxu0 %v623
        %655 = vmatpush.msra.mxu0 %v622
        %656 = vmatpush.msra.mxu0 %v621
        %657 = vmatpush.msra.mxu0 %v620
        %658 = vmatpush.msra.mxu0 %v619
        %659 = vmatpush.msra.mxu0 %v618
        %660 = vmatpush.msra.mxu0 %v617
        %661 = vmatpush.msra.mxu0 %v616
        %662 = vmatpush.msra.mxu0 %v615
        %663 = vmatmul.f32.gmra.mxu0 %v202
        %v664 = vpop.f32.mrf.mxu0
        %v665 = vadd.f32 0.0, %v664
        %666 = vmatmul.f32.gmra.mxu0 %v204
        %v667 = vpop.f32.mrf.mxu0
        %v668 = vadd.f32 0.0, %v667
        %669 = vdwg.mxu0
        %670 = vmatpush.msra.mxu0 %v646
        %671 = vmatpush.msra.mxu0 %v645
        %672 = vmatpush.msra.mxu0 %v644
        %673 = vmatpush.msra.mxu0 %v643
        %674 = vmatpush.msra.mxu0 %v642
        %675 = vmatpush.msra.mxu0 %v641
        %676 = vmatpush.msra.mxu0 %v640
        %677 = vmatpush.msra.mxu0 %v639
        %678 = vmatpush.msra.mxu0 %v638
        %679 = vmatpush.msra.mxu0 %v637
        %680 = vmatpush.msra.mxu0 %v636
        %681 = vmatpush.msra.mxu0 %v635
        %682 = vmatpush.msra.mxu0 %v634
        %683 = vmatpush.msra.mxu0 %v633
        %684 = vmatpush.msra.mxu0 %v632
        %685 = vmatpush.msra.mxu0 %v631
        %686 = vmatmul.f32.gmra.mxu0 %v203
        %v687 = vpop.f32.mrf.mxu0
        %v688 = vadd.f32 %v665, %v687
        %689 = vmatmul.f32.gmra.mxu0 %v205
        %v690 = vpop.f32.mrf.mxu0
        %v691 = vadd.f32 %v668, %v690
        %692 = vdwg.mxu0
        %s693 = scalar_lea.vmem %s199, 80 [#allocation7]
        %694 = vst [vmem:[%s693] sm:$0xff] %v688
        %695 = vst [vmem:[%s693 + $0x8] sm:$0xff] %v691
        %s696 = scalar_lea.vmem [#allocation5], 1536
        %v697 = vld [vmem:[%s696] sm:$0xff]
        %v698 = vld [vmem:[%s696 + $0x8] sm:$0xff]
        %v699 = vld [vmem:[%s696 + $0x10] sm:$0xff]
        %v700 = vld [vmem:[%s696 + $0x18] sm:$0xff]
        %v701 = vld [vmem:[%s696 + $0x20] sm:$0xff]
        %v702 = vld [vmem:[%s696 + $0x28] sm:$0xff]
        %v703 = vld [vmem:[%s696 + $0x30] sm:$0xff]
        %v704 = vld [vmem:[%s696 + $0x38] sm:$0xff]
        %v705 = vld [vmem:[%s696 + $0x40] sm:$0xff]
        %v706 = vld [vmem:[%s696 + $0x48] sm:$0xff]
        %v707 = vld [vmem:[%s696 + $0x50] sm:$0xff]
        %v708 = vld [vmem:[%s696 + $0x58] sm:$0xff]
        %v709 = vld [vmem:[%s696 + $0x60] sm:$0xff]
        %v710 = vld [vmem:[%s696 + $0x68] sm:$0xff]
        %v711 = vld [vmem:[%s696 + $0x70] sm:$0xff]
        %v712 = vld [vmem:[%s696 + $0x78] sm:$0xff]
        %v713 = vld [vmem:[%s696 + $0x80] sm:$0xff]
        %v714 = vld [vmem:[%s696 + $0x88] sm:$0xff]
        %v715 = vld [vmem:[%s696 + $0x90] sm:$0xff]
        %v716 = vld [vmem:[%s696 + $0x98] sm:$0xff]
        %v717 = vld [vmem:[%s696 + $0xa0] sm:$0xff]
        %v718 = vld [vmem:[%s696 + $0xa8] sm:$0xff]
        %v719 = vld [vmem:[%s696 + $0xb0] sm:$0xff]
        %v720 = vld [vmem:[%s696 + $0xb8] sm:$0xff]
        %v721 = vld [vmem:[%s696 + $0xc0] sm:$0xff]
        %v722 = vld [vmem:[%s696 + $0xc8] sm:$0xff]
        %v723 = vld [vmem:[%s696 + $0xd0] sm:$0xff]
        %v724 = vld [vmem:[%s696 + $0xd8] sm:$0xff]
        %v725 = vld [vmem:[%s696 + $0xe0] sm:$0xff]
        %v726 = vld [vmem:[%s696 + $0xe8] sm:$0xff]
        %v727 = vld [vmem:[%s696 + $0xf0] sm:$0xff]
        %v728 = vld [vmem:[%s696 + $0xf8] sm:$0xff]
        %729 = vmatpush.msra.mxu0 %v712
        %730 = vmatpush.msra.mxu0 %v711
        %731 = vmatpush.msra.mxu0 %v710
        %732 = vmatpush.msra.mxu0 %v709
        %733 = vmatpush.msra.mxu0 %v708
        %734 = vmatpush.msra.mxu0 %v707
        %735 = vmatpush.msra.mxu0 %v706
        %736 = vmatpush.msra.mxu0 %v705
        %737 = vmatpush.msra.mxu0 %v704
        %738 = vmatpush.msra.mxu0 %v703
        %739 = vmatpush.msra.mxu0 %v702
        %740 = vmatpush.msra.mxu0 %v701
        %741 = vmatpush.msra.mxu0 %v700
        %742 = vmatpush.msra.mxu0 %v699
        %743 = vmatpush.msra.mxu0 %v698
        %744 = vmatpush.msra.mxu0 %v697
        %745 = vmatmul.f32.gmra.mxu0 %v202
        %v746 = vpop.f32.mrf.mxu0
        %v747 = vadd.f32 0.0, %v746
        %748 = vmatmul.f32.gmra.mxu0 %v204
        %v749 = vpop.f32.mrf.mxu0
        %v750 = vadd.f32 0.0, %v749
        %751 = vdwg.mxu0
        %752 = vmatpush.msra.mxu0 %v728
        %753 = vmatpush.msra.mxu0 %v727
        %754 = vmatpush.msra.mxu0 %v726
        %755 = vmatpush.msra.mxu0 %v725
        %756 = vmatpush.msra.mxu0 %v724
        %757 = vmatpush.msra.mxu0 %v723
        %758 = vmatpush.msra.mxu0 %v722
        %759 = vmatpush.msra.mxu0 %v721
        %760 = vmatpush.msra.mxu0 %v720
        %761 = vmatpush.msra.mxu0 %v719
        %762 = vmatpush.msra.mxu0 %v718
        %763 = vmatpush.msra.mxu0 %v717
        %764 = vmatpush.msra.mxu0 %v716
        %765 = vmatpush.msra.mxu0 %v715
        %766 = vmatpush.msra.mxu0 %v714
        %767 = vmatpush.msra.mxu0 %v713
        %768 = vmatmul.f32.gmra.mxu0 %v203
        %v769 = vpop.f32.mrf.mxu0
        %v770 = vadd.f32 %v747, %v769
        %771 = vmatmul.f32.gmra.mxu0 %v205
        %v772 = vpop.f32.mrf.mxu0
        %v773 = vadd.f32 %v750, %v772
        %774 = vdwg.mxu0
        %s775 = scalar_lea.vmem %s199, 96 [#allocation7]
        %776 = vst [vmem:[%s775] sm:$0xff] %v770
        %777 = vst [vmem:[%s775 + $0x8] sm:$0xff] %v773
        %s778 = scalar_lea.vmem [#allocation5], 1792
        %v779 = vld [vmem:[%s778] sm:$0xff]
        %v780 = vld [vmem:[%s778 + $0x8] sm:$0xff]
        %v781 = vld [vmem:[%s778 + $0x10] sm:$0xff]
        %v782 = vld [vmem:[%s778 + $0x18] sm:$0xff]
        %v783 = vld [vmem:[%s778 + $0x20] sm:$0xff]
        %v784 = vld [vmem:[%s778 + $0x28] sm:$0xff]
        %v785 = vld [vmem:[%s778 + $0x30] sm:$0xff]
        %v786 = vld [vmem:[%s778 + $0x38] sm:$0xff]
        %v787 = vld [vmem:[%s778 + $0x40] sm:$0xff]
        %v788 = vld [vmem:[%s778 + $0x48] sm:$0xff]
        %v789 = vld [vmem:[%s778 + $0x50] sm:$0xff]
        %v790 = vld [vmem:[%s778 + $0x58] sm:$0xff]
        %v791 = vld [vmem:[%s778 + $0x60] sm:$0xff]
        %v792 = vld [vmem:[%s778 + $0x68] sm:$0xff]
        %v793 = vld [vmem:[%s778 + $0x70] sm:$0xff]
        %v794 = vld [vmem:[%s778 + $0x78] sm:$0xff]
        %v795 = vld [vmem:[%s778 + $0x80] sm:$0xff]
        %v796 = vld [vmem:[%s778 + $0x88] sm:$0xff]
        %v797 = vld [vmem:[%s778 + $0x90] sm:$0xff]
        %v798 = vld [vmem:[%s778 + $0x98] sm:$0xff]
        %v799 = vld [vmem:[%s778 + $0xa0] sm:$0xff]
        %v800 = vld [vmem:[%s778 + $0xa8] sm:$0xff]
        %v801 = vld [vmem:[%s778 + $0xb0] sm:$0xff]
        %v802 = vld [vmem:[%s778 + $0xb8] sm:$0xff]
        %v803 = vld [vmem:[%s778 + $0xc0] sm:$0xff]
        %v804 = vld [vmem:[%s778 + $0xc8] sm:$0xff]
        %v805 = vld [vmem:[%s778 + $0xd0] sm:$0xff]
        %v806 = vld [vmem:[%s778 + $0xd8] sm:$0xff]
        %v807 = vld [vmem:[%s778 + $0xe0] sm:$0xff]
        %v808 = vld [vmem:[%s778 + $0xe8] sm:$0xff]
        %v809 = vld [vmem:[%s778 + $0xf0] sm:$0xff]
        %v810 = vld [vmem:[%s778 + $0xf8] sm:$0xff]
        %811 = vmatpush.msra.mxu0 %v794
        %812 = vmatpush.msra.mxu0 %v793
        %813 = vmatpush.msra.mxu0 %v792
        %814 = vmatpush.msra.mxu0 %v791
        %815 = vmatpush.msra.mxu0 %v790
        %816 = vmatpush.msra.mxu0 %v789
        %817 = vmatpush.msra.mxu0 %v788
        %818 = vmatpush.msra.mxu0 %v787
        %819 = vmatpush.msra.mxu0 %v786
        %820 = vmatpush.msra.mxu0 %v785
        %821 = vmatpush.msra.mxu0 %v784
        %822 = vmatpush.msra.mxu0 %v783
        %823 = vmatpush.msra.mxu0 %v782
        %824 = vmatpush.msra.mxu0 %v781
        %825 = vmatpush.msra.mxu0 %v780
        %826 = vmatpush.msra.mxu0 %v779
        %827 = vmatmul.f32.gmra.mxu0 %v202
        %v828 = vpop.f32.mrf.mxu0
        %v829 = vadd.f32 0.0, %v828
        %830 = vmatmul.f32.gmra.mxu0 %v204
        %v831 = vpop.f32.mrf.mxu0
        %v832 = vadd.f32 0.0, %v831
        %833 = vdwg.mxu0
        %834 = vmatpush.msra.mxu0 %v810
        %835 = vmatpush.msra.mxu0 %v809
        %836 = vmatpush.msra.mxu0 %v808
        %837 = vmatpush.msra.mxu0 %v807
        %838 = vmatpush.msra.mxu0 %v806
        %839 = vmatpush.msra.mxu0 %v805
        %840 = vmatpush.msra.mxu0 %v804
        %841 = vmatpush.msra.mxu0 %v803
        %842 = vmatpush.msra.mxu0 %v802
        %843 = vmatpush.msra.mxu0 %v801
        %844 = vmatpush.msra.mxu0 %v800
        %845 = vmatpush.msra.mxu0 %v799
        %846 = vmatpush.msra.mxu0 %v798
        %847 = vmatpush.msra.mxu0 %v797
        %848 = vmatpush.msra.mxu0 %v796
        %849 = vmatpush.msra.mxu0 %v795
        %850 = vmatmul.f32.gmra.mxu0 %v203
        %v851 = vpop.f32.mrf.mxu0
        %v852 = vadd.f32 %v829, %v851
        %853 = vmatmul.f32.gmra.mxu0 %v205
        %v854 = vpop.f32.mrf.mxu0
        %v855 = vadd.f32 %v832, %v854
        %856 = vdwg.mxu0
        %s857 = scalar_lea.vmem %s199, 112 [#allocation7]
        %858 = vst [vmem:[%s857] sm:$0xff] %v852
        %859 = vst [vmem:[%s857 + $0x8] sm:$0xff] %v855
        %s860 = sand.u32 %s91, 1
        %s861 = scalar_lea.sflag [#allocation4], %s860
        %s862 = sand.u32 %s91, 1
        %s863 = smul.addr %s862, 128
        %s864 = scalar_lea.vmem [#allocation7], %s863
        // Predicated region
        $region37: #{tpu_custom_call.1} parent=27 // pred_check
          %p865 = pneg %p101
        $region38: #{tpu_custom_call.1} parent=27 // pred_check_branch
          %867 = sbr.rel (%p865) target = $region40
        $region39: #{tpu_custom_call.1} parent=27 // pred_region
          %s868 = smul.u32 2, %s25
          %870 = vsyncadd %s861, 0
          %s871 = smul.addr %s24, 16
          %s872 = sadd.s32 %s868, %s871
          %s873 = smul.addr %s872, 8
          %s874 = scalar_lea.hbm %s2, %s873
          %s875 = sshll.u32 %s864, 4
          %s876 = int_to_ptr.vmem [resolvable:$true] %s875
          %s877 = sshll.u32 %s874, 4
          %s878 = int_to_ptr.hbm [resolvable:$true] %s877
          %883 = dma.vmem_to_hbm [thread:$0]  %s876, 2048, %s878, %s861, 128, 128, 8
        $region40: #{tpu_custom_call.1} parent=27 // pred_fallthru
          _
      $region28: #{tpu_custom_call.1} parent=5 // pred_fallthru
        _
      %p884 = scmp.le.s32.totalorder 2, %s15
      // Predicated region
      $region41: #{tpu_custom_call.1} parent=5 // pred_check
        %p885 = pneg %p884
      $region42: #{tpu_custom_call.1} parent=5 // pred_check_branch
        %887 = sbr.rel (%p885) target = $region44
      $region43: #{tpu_custom_call.1} parent=5 // pred_region
        %s888 = ssub.s32 %s15, 2
        // Predicated region
        $region45: #{tpu_custom_call.1} parent=43 // pred_check
          %p889 = pneg %p107
        $region46: #{tpu_custom_call.1} parent=43 // pred_check_branch
          %891 = sbr.rel (%p889) target = $region48
        $region47: #{tpu_custom_call.1} parent=43 // pred_region
          %s892 = sand.u32 %s92, 1
          %s893 = scalar_lea.sflag [#allocation4], %s892
          %s894 = sand.u32 %s92, 1
          %s895 = smul.addr %s894, 128
          %s896 = scalar_lea.vmem [#allocation7], %s895
          %898 = dma.done %s893, 2048
        $region48: #{tpu_custom_call.1} parent=43 // pred_fallthru
          _
      $region44: #{tpu_custom_call.1} parent=5 // pred_fallthru
        _
    $region6: #{tpu_custom_call.1} parent=1 // loop_footer
      %s19 = sadd.s32 1, %s15
    $region7: #{tpu_custom_call.1} parent=1 // loop_footer_branch
      %14 = sbr.rel target = $region3
    $region8: #{tpu_custom_call.1} parent=1 // loop_exit
      _
    %899 = vsyncpa [#allocation3], 1
    %s900 = scalar_lea.sflag [#allocation3], 1
    %901 = vsyncpa %s900, 1
    %902 = vsyncpa [#allocation6], 1
    %903 = vsyncpa [#allocation4], 1
    %s904 = scalar_lea.sflag [#allocation4], 1
    %905 = vsyncpa %s904, 1

</llo_original>
